<compile_context>
chip_gen: v6e
topology: v6e:2x2x1
jax: 0.10.0
libtpu: 0.0.40
codegen_flags: <defaults>
</compile_context>

<pallas_src>
import functools

import jax
import jax.numpy as jnp
from jax.experimental import pallas as pl
from jax.experimental.pallas import tpu as pltpu

LAYER_DEPTH = 4  # matches DeepNeuralNetwork(layer_depth=4); activation-only loop
_SUB = 16        # bf16 packs 2 rows per 32-bit sublane; keep row tiles 16-aligned


def _round_up(n, m):
    return ((n + m - 1) // m) * m


def _vmem_budget_bytes():
    """~85% of per-core VMEM; falls back to the smallest generation (v7x, 64 MiB)."""
    try:
        cap = pltpu.get_tpu_info().vmem_capacity_bytes
    except Exception:
        cap = 64 * 1024 * 1024
    return int(cap * 0.85)


def dnn_kernel(x_ref, w1_ref, b1_ref, wout_ref, bout_ref, o_ref):
    # fc1 on the bf16 MXU, f32 accumulate; bias add + ReLU in f32 (v5e-safe).
    h = jnp.dot(x_ref[...], w1_ref[...], preferred_element_type=jnp.float32)
    h = jnp.maximum(h + b1_ref[...], 0.0)  # single ReLU (idempotent fcn loop)
    # out layer: cast the activation to bf16 only at the MXU boundary.
    y = jnp.dot(h.astype(jnp.bfloat16), wout_ref[...],
                preferred_element_type=jnp.float32)
    o_ref[...] = (y + bout_ref[...]).astype(o_ref.dtype)


def prepare_params(w1, b1, wout, bout):
    """One-time: transpose PyTorch [out,in] weights, pad to 128 lanes, cast to bf16.

    Keeps the per-call forward path free of weight transpose/pad/cast traffic.
    w1: [hidden, in]; b1: [hidden]; wout: [out, hidden]; bout: [out].
    """
    hidden, in_size = w1.shape
    out_size = wout.shape[0]
    IN_P = _round_up(in_size, 128)
    H_P = _round_up(hidden, 128)
    OUT_P = _round_up(out_size, 128)
    bf16, f32 = jnp.bfloat16, jnp.float32
    w1_p = jnp.zeros((IN_P, H_P), bf16).at[:in_size, :hidden].set(w1.T.astype(bf16))
    b1_p = jnp.zeros((1, H_P), f32).at[0, :hidden].set(b1.reshape(-1).astype(f32))
    wout_p = jnp.zeros((H_P, OUT_P), bf16).at[:hidden, :out_size].set(wout.T.astype(bf16))
    bout_p = jnp.zeros((1, OUT_P), f32).at[0, :out_size].set(bout.reshape(-1).astype(f32))
    return w1_p, b1_p, wout_p, bout_p, out_size


@functools.partial(jax.jit, static_argnames=("out_size", "tile_b"))
def _forward_padded(x, w1_p, b1_p, wout_p, bout_p, *, out_size, tile_b):
    B, in_size = x.shape
    IN_P, H_P = w1_p.shape
    OUT_P = wout_p.shape[1]
    assert in_size <= IN_P, "x feature dim does not match prepared params"

    # --- batch tiling -------------------------------------------------------
    # Near-B padding (16-row aligned), tile a multiple of 16, and >=4 (or >=2)
    # grid blocks when the batch allows so both v7x TensorCores get work.
    b_base = _round_up(B, _SUB)
    tile = _round_up(min(tile_b, b_base), _SUB)
    for min_blocks in (4, 2):
        if b_base >= min_blocks * _SUB:
            tile = min(tile, _round_up(-(-b_base // min_blocks), _SUB))
            break

    # --- VMEM sizing --------------------------------------------------------
    budget = _vmem_budget_bytes()
    # Resident weights/biases are double-buffered by the default pipeline (2x).
    weight_bytes = 2 * (IN_P * H_P * 2 + H_P * OUT_P * 2 + H_P * 4 + OUT_P * 4)

    def tile_bytes(t):  # double-buffered bf16 x tile + f32 out tile
        return 2 * (t * IN_P * 2 + t * OUT_P * 4)

    while tile > _SUB and weight_bytes + tile_bytes(tile) > budget:
        tile = _round_up(tile // 2, _SUB)
    # TODO(synk): if weight_bytes alone exceeds the budget (very large hidden/in),
    # add an H/K-tiled grid axis ("arbitrary") with an f32 VMEM accumulator, or
    # single-buffer the resident weights (pipeline_mode=pl.Buffered(1) / scratch DMA).

    B_P = _round_up(b_base, tile)
    grid = (B_P // tile,)

    x_p = jnp.zeros((B_P, IN_P), jnp.bfloat16).at[:B, :in_size].set(
        x.astype(jnp.bfloat16))

    flops = 2 * B_P * IN_P * H_P + 2 * B_P * H_P * OUT_P
    bytes_accessed = (B_P * IN_P * 2 + IN_P * H_P * 2 + H_P * 4
                      + H_P * OUT_P * 2 + OUT_P * 4 + B_P * OUT_P * 4)

    vmem_limit = int(min(budget,
                         max(32 << 20, weight_bytes + tile_bytes(tile) + (4 << 20))))

    y_p = pl.pallas_call(
        dnn_kernel,
        out_shape=jax.ShapeDtypeStruct((B_P, OUT_P), jnp.float32),
        grid_spec=pltpu.PrefetchScalarGridSpec(
            num_scalar_prefetch=0,
            grid=grid,
            in_specs=[
                pl.BlockSpec((tile, IN_P), lambda i: (i, 0)),    # x row tile (bf16)
                pl.BlockSpec((IN_P, H_P), lambda i: (0, 0)),     # w1 (resident, bf16)
                pl.BlockSpec((1, H_P), lambda i: (0, 0)),        # b1 (resident, f32)
                pl.BlockSpec((H_P, OUT_P), lambda i: (0, 0)),    # wout (resident, bf16)
                pl.BlockSpec((1, OUT_P), lambda i: (0, 0)),      # bout (resident, f32)
            ],
            out_specs=pl.BlockSpec((tile, OUT_P), lambda i: (i, 0)),
        ),
        compiler_params=pltpu.CompilerParams(
            dimension_semantics=("parallel",),   # v7x: both TCs share the batch
            vmem_limit_bytes=vmem_limit,
        ),
        cost_estimate=pl.CostEstimate(
            flops=flops, transcendentals=0, bytes_accessed=bytes_accessed),
    )(x_p, w1_p, b1_p, wout_p, bout_p)

    return y_p[:B, :out_size]


def deep_nn_forward(x, params, *, tile_b=512):
    """x: [B, in]; params: output of prepare_params(...)."""
    w1_p, b1_p, wout_p, bout_p, out_size = params
    return _forward_padded(x, w1_p, b1_p, wout_p, bout_p,
                           out_size=out_size, tile_b=tile_b)


def init_params(key, in_size, hidden_size, out_size):
    """PyTorch-Linear-style init: U(-1/sqrt(fan_in), 1/sqrt(fan_in))."""
    k1, k2, k3, k4 = jax.random.split(key, 4)
    bound1 = 1.0 / jnp.sqrt(in_size)
    w1 = jax.random.uniform(k1, (hidden_size, in_size), jnp.float32, -bound1, bound1)
    b1 = jax.random.uniform(k2, (hidden_size,), jnp.float32, -bound1, bound1)
    bound2 = 1.0 / jnp.sqrt(hidden_size)
    wout = jax.random.uniform(k3, (out_size, hidden_size), jnp.float32, -bound2, bound2)
    bout = jax.random.uniform(k4, (out_size,), jnp.float32, -bound2, bound2)
    return w1, b1, wout, bout


if __name__ == "__main__":
    B, in_size, hidden_size, out_size = 8, 32, 32, 16

    key = jax.random.PRNGKey(0)
    kx, kp = jax.random.split(key)
    x = jax.random.normal(kx, (B, in_size), jnp.float32)
    w1, b1, wout, bout = init_params(kp, in_size, hidden_size, out_size)

    params = prepare_params(w1, b1, wout, bout)   # one-time pad/transpose/bf16 cast
    y = deep_nn_forward(x, params)
    jax.block_until_ready(y)

    # Pure-JAX f32 reference (same math as the PyTorch forward, incl. the
    # activation-only fcn loop). Kernel feeds the MXU bf16 with f32 accumulate,
    # so the tolerance is relaxed accordingly.
    h_ref = jnp.maximum(x @ w1.T + b1[None, :], 0.0)
    for _ in range(LAYER_DEPTH):
        h_ref = jnp.maximum(h_ref, 0.0)
    y_ref = h_ref @ wout.T + bout[None, :]
    assert y.shape == (B, out_size), f"bad output shape {y.shape}"
    assert jnp.allclose(y, y_ref, atol=2e-2, rtol=2e-2), "mismatch vs reference"

    print("KERNEL_OK")
</pallas_src>

<mosaic_0001>
module attributes {stable_mosaic.version = 11 : i64} {
  func.func @dnn_kernel(%arg0: i32, %arg1: memref<16x128xbf16, #tpu.memory_space<vmem>>, %arg2: memref<128x128xbf16, #tpu.memory_space<vmem>>, %arg3: memref<1x128xf32, #tpu.memory_space<vmem>>, %arg4: memref<128x128xbf16, #tpu.memory_space<vmem>>, %arg5: memref<1x128xf32, #tpu.memory_space<vmem>>, %arg6: memref<16x128xf32, #tpu.memory_space<vmem>>) attributes {dimension_semantics = [#tpu.dimension_semantics<parallel>], iteration_bounds = array<i64: 1>, scalar_prefetch = 0 : i64, scratch_operands = 0 : i64, tpu.core_type = #tpu.core_type<tc>, window_params = [{transform_indices = @transform_0, window_bounds = array<i64: 16, 128>}, {pipeline_mode = #tpu.pipeline_mode<synchronous>, transform_indices = @transform_1, window_bounds = array<i64: 128, 128>}, {pipeline_mode = #tpu.pipeline_mode<synchronous>, transform_indices = @transform_2, window_bounds = array<i64: 1, 128>}, {pipeline_mode = #tpu.pipeline_mode<synchronous>, transform_indices = @transform_3, window_bounds = array<i64: 128, 128>}, {pipeline_mode = #tpu.pipeline_mode<synchronous>, transform_indices = @transform_4, window_bounds = array<i64: 1, 128>}, {transform_indices = @transform_5, window_bounds = array<i64: 16, 128>}]} {
    %c0 = arith.constant 0 : index
    %c0_0 = arith.constant 0 : index
    %0 = vector.load %arg1[%c0, %c0_0] : memref<16x128xbf16, #tpu.memory_space<vmem>>, vector<16x128xbf16>
    %c0_1 = arith.constant 0 : index
    %c0_2 = arith.constant 0 : index
    %1 = vector.load %arg2[%c0_1, %c0_2] : memref<128x128xbf16, #tpu.memory_space<vmem>>, vector<128x128xbf16>
    %cst = arith.constant dense<0.000000e+00> : vector<16x128xf32>
    %2 = tpu.matmul %0, %1, %cst {dimension_numbers = #tpu.dot_dimension_numbers<[1], [0], [0], [1], [0, 0, 1, 1], [], []>} : vector<16x128xbf16>, vector<128x128xbf16>, vector<16x128xf32> -> vector<16x128xf32>
    %c0_3 = arith.constant 0 : index
    %c0_4 = arith.constant 0 : index
    %3 = vector.load %arg3[%c0_3, %c0_4] : memref<1x128xf32, #tpu.memory_space<vmem>>, vector<1x128xf32>
    %4 = vector.broadcast %3 : vector<1x128xf32> to vector<16x128xf32>
    %5 = arith.addf %2, %4 : vector<16x128xf32>
    %cst_5 = arith.constant 0.000000e+00 : f32
    %6 = vector.broadcast %cst_5 : f32 to vector<16x128xf32>
    %7 = arith.maximumf %5, %6 : vector<16x128xf32>
    %8 = arith.truncf %7 : vector<16x128xf32> to vector<16x128xbf16>
    %c0_6 = arith.constant 0 : index
    %c0_7 = arith.constant 0 : index
    %9 = vector.load %arg4[%c0_6, %c0_7] : memref<128x128xbf16, #tpu.memory_space<vmem>>, vector<128x128xbf16>
    %cst_8 = arith.constant dense<0.000000e+00> : vector<16x128xf32>
    %10 = tpu.matmul %8, %9, %cst_8 {dimension_numbers = #tpu.dot_dimension_numbers<[1], [0], [0], [1], [0, 0, 1, 1], [], []>} : vector<16x128xbf16>, vector<128x128xbf16>, vector<16x128xf32> -> vector<16x128xf32>
    %c0_9 = arith.constant 0 : index
    %c0_10 = arith.constant 0 : index
    %11 = vector.load %arg5[%c0_9, %c0_10] : memref<1x128xf32, #tpu.memory_space<vmem>>, vector<1x128xf32>
    %12 = vector.broadcast %11 : vector<1x128xf32> to vector<16x128xf32>
    %13 = arith.addf %10, %12 : vector<16x128xf32>
    %c0_11 = arith.constant 0 : index
    %c0_12 = arith.constant 0 : index
    %14 = vector.load %arg6[%c0_11, %c0_12] : memref<16x128xf32, #tpu.memory_space<vmem>>, vector<16x128xf32>
    tpu.vector_store %arg6[%c0_11, %c0_12], %13 {strides = array<i32>} : memref<16x128xf32, #tpu.memory_space<vmem>>, vector<16x128xf32>,
    return
  }
  func.func @transform_0(%arg0: i32) -> (i32, i32) {
    %c0_i32 = arith.constant 0 : i32
    %c0_i32_0 = arith.constant 0 : i32
    return %arg0, %c0_i32 : i32, i32
  }
  func.func @transform_1(%arg0: i32) -> (i32, i32) {
    %c0_i32 = arith.constant 0 : i32
    %c0_i32_0 = arith.constant 0 : i32
    %c0_i32_1 = arith.constant 0 : i32
    return %c0_i32, %c0_i32_0 : i32, i32
  }
  func.func @transform_2(%arg0: i32) -> (i32, i32) {
    %c0_i32 = arith.constant 0 : i32
    %c0_i32_0 = arith.constant 0 : i32
    %c0_i32_1 = arith.constant 0 : i32
    return %c0_i32, %c0_i32_0 : i32, i32
  }
  func.func @transform_3(%arg0: i32) -> (i32, i32) {
    %c0_i32 = arith.constant 0 : i32
    %c0_i32_0 = arith.constant 0 : i32
    %c0_i32_1 = arith.constant 0 : i32
    return %c0_i32, %c0_i32_0 : i32, i32
  }
  func.func @transform_4(%arg0: i32) -> (i32, i32) {
    %c0_i32 = arith.constant 0 : i32
    %c0_i32_0 = arith.constant 0 : i32
    %c0_i32_1 = arith.constant 0 : i32
    return %c0_i32, %c0_i32_0 : i32, i32
  }
  func.func @transform_5(%arg0: i32) -> (i32, i32) {
    %c0_i32 = arith.constant 0 : i32
    %c0_i32_0 = arith.constant 0 : i32
    return %arg0, %c0_i32 : i32, i32
  }
}

</mosaic_0001>

<llo_original>
// kernel: _forward_padded.1
$region0: #{_forward_padded.1}
  #allocation0 [shape = 'u32[]', space=smem, size = 0x4, offset = 0x4, fixed_abs, tag = 'smem constant byte address 0x4 - core index']
  #allocation1 [shape = 'u32[144,128]{1,0:T(1,128)}', space=vmem, size = 0x12000, scoped, tag = 'internal scratch']
  %s0 = inlined_call_operand.vmem [shape: bf16[16,128], index: 0, kind: input, shape index: {}]
  %s1 = inlined_call_operand.hbm [shape: bf16[128,128], index: 1, kind: input, shape index: {}]
  %s2 = inlined_call_operand.vmem [shape: f32[1,128], index: 2, kind: input, shape index: {}]
  %s3 = inlined_call_operand.hbm [shape: bf16[128,128], index: 3, kind: input, shape index: {}]
  %s4 = inlined_call_operand.vmem [shape: f32[1,128], index: 4, kind: input, shape index: {}]
  %s5 = inlined_call_operand.vmem [shape: f32[16,128], index: 5, kind: output, shape index: {}]
  %s6 = sld [smem:[#allocation0]]
  $region38: #{_forward_padded.1} parent=0
    _
  %s8 = ssub.s32 1, %s6
  %s9 = scalar_select 0, %s8, %s6
  $region1: #{_forward_padded.1} parent=0
    #allocation2 [shape = 'u8[32768]{0}', space=vmem, size = 0x8000, scoped, tag = 'input window, operand 1, single buffered']
    #allocation3 [shape = 's32[1]{0}', space=sflag, size = 0x4, scoped, tag = 'scoped memory for _forward_padded.1']
    #allocation4 [shape = 'u8[32768]{0}', space=vmem, size = 0x8000, scoped, tag = 'input window, operand 3, single buffered']
    #allocation5 [shape = 's32[1]{0}', space=sflag, size = 0x4, scoped, tag = 'scoped memory for _forward_padded.1']
    %10 = vsyncpa [#allocation3], 0
    %11 = vsyncpa [#allocation5], 0
    // Predicated region
    $region2: #{_forward_padded.1} parent=1 // pred_check
      _
    $region3: #{_forward_padded.1} parent=1 // pred_check_branch
      %13 = sbr.rel (0) target = $region5
    $region4: #{_forward_padded.1} parent=1 // pred_region
      _
    $region5: #{_forward_padded.1} parent=1 // pred_fallthru
      _
    // Predicated region
    $region6: #{_forward_padded.1} parent=1 // pred_check
      _
    $region7: #{_forward_padded.1} parent=1 // pred_check_branch
      %15 = sbr.rel (0) target = $region9
    $region8: #{_forward_padded.1} parent=1 // pred_region
      %s17 = ssub.s32 1024, 1024
      %18 = vsyncadd [#allocation3], %s17
      %s19 = sshll.u32 [#allocation2], 4
      %s20 = int_to_ptr.vmem [resolvable:$true] %s19
      %25 = dma.hbm_to_vmem [thread:$0]  %s1, 1024, %s20, [#allocation3], 64, 64, 4
    $region9: #{_forward_padded.1} parent=1 // pred_fallthru
      _
    // Predicated region
    $region10: #{_forward_padded.1} parent=1 // pred_check
      _
    $region11: #{_forward_padded.1} parent=1 // pred_check_branch
      %27 = sbr.rel (0) target = $region13
    $region12: #{_forward_padded.1} parent=1 // pred_region
      _
    $region13: #{_forward_padded.1} parent=1 // pred_fallthru
      _
    // Predicated region
    $region14: #{_forward_padded.1} parent=1 // pred_check
      _
    $region15: #{_forward_padded.1} parent=1 // pred_check_branch
      %29 = sbr.rel (0) target = $region17
    $region16: #{_forward_padded.1} parent=1 // pred_region
      %s31 = ssub.s32 1024, 1024
      %32 = vsyncadd [#allocation5], %s31
      %s33 = sshll.u32 [#allocation4], 4
      %s34 = int_to_ptr.vmem [resolvable:$true] %s33
      %39 = dma.hbm_to_vmem [thread:$0]  %s3, 1024, %s34, [#allocation5], 64, 64, 4
    $region17: #{_forward_padded.1} parent=1 // pred_fallthru
      _
    // Predicated region
    $region18: #{_forward_padded.1} parent=1 // pred_check
      _
    $region19: #{_forward_padded.1} parent=1 // pred_check_branch
      %41 = sbr.rel (0) target = $region21
    $region20: #{_forward_padded.1} parent=1 // pred_region
      _
    $region21: #{_forward_padded.1} parent=1 // pred_fallthru
      _
    // Predicated region
    $region22: #{_forward_padded.1} parent=1 // pred_check
      _
    $region23: #{_forward_padded.1} parent=1 // pred_check_branch
      %43 = sbr.rel (0) target = $region25
    $region24: #{_forward_padded.1} parent=1 // pred_region
      %44 = dma.done [#allocation3], 1024
    $region25: #{_forward_padded.1} parent=1 // pred_fallthru
      _
    // Predicated region
    $region26: #{_forward_padded.1} parent=1 // pred_check
      _
    $region27: #{_forward_padded.1} parent=1 // pred_check_branch
      %46 = sbr.rel (0) target = $region29
    $region28: #{_forward_padded.1} parent=1 // pred_region
      %47 = dma.done [#allocation5], 1024
    $region29: #{_forward_padded.1} parent=1 // pred_fallthru
      _
    %v49 = vld [vmem:[%s0] sm:$0xf]
    %v50 = vld [vmem:[%s0 + $0x4] sm:$0xf]
    %v51 = vld [vmem:[#allocation2] sm:$0xf]
    %v52 = vld [vmem:[#allocation2 + $0x4] sm:$0xf]
    %v53 = vld [vmem:[#allocation2 + $0x8] sm:$0xf]
    %v54 = vld [vmem:[#allocation2 + $0xc] sm:$0xf]
    %v55 = vld [vmem:[#allocation2 + $0x10] sm:$0xf]
    %v56 = vld [vmem:[#allocation2 + $0x14] sm:$0xf]
    %v57 = vld [vmem:[#allocation2 + $0x18] sm:$0xf]
    %v58 = vld [vmem:[#allocation2 + $0x1c] sm:$0xf]
    %v59 = vld [vmem:[#allocation2 + $0x20] sm:$0xf]
    %v60 = vld [vmem:[#allocation2 + $0x24] sm:$0xf]
    %v61 = vld [vmem:[#allocation2 + $0x28] sm:$0xf]
    %v62 = vld [vmem:[#allocation2 + $0x2c] sm:$0xf]
    %v63 = vld [vmem:[#allocation2 + $0x30] sm:$0xf]
    %v64 = vld [vmem:[#allocation2 + $0x34] sm:$0xf]
    %v65 = vld [vmem:[#allocation2 + $0x38] sm:$0xf]
    %v66 = vld [vmem:[#allocation2 + $0x3c] sm:$0xf]
    %v67 = vld [vmem:[%s2] sm:$0x1]
    %v69 = vlaneseq
    %v70 = vshrl.u32 %v69, 7
    %v71 = vsub.s32 0, %v70
    %v72 = vrot.slane %v67, %v71
    %v76 = vunpack.c.l.b16 %v49
    %v77 = vunpack.c.l.b16 %v50
    %v78 = vpack.c.b16 %v77, %v76
    %v96 = vunpack.c.l.b16 %v51
    %v97 = vunpack.c.l.b16 %v52
    %v98 = vunpack.c.l.b16 %v53
    %v99 = vunpack.c.l.b16 %v54
    %v100 = vunpack.c.l.b16 %v55
    %v101 = vunpack.c.l.b16 %v56
    %v102 = vunpack.c.l.b16 %v57
    %v103 = vunpack.c.l.b16 %v58
    %v104 = vunpack.c.l.b16 %v59
    %v105 = vunpack.c.l.b16 %v60
    %v106 = vunpack.c.l.b16 %v61
    %v107 = vunpack.c.l.b16 %v62
    %v108 = vunpack.c.l.b16 %v63
    %v109 = vunpack.c.l.b16 %v64
    %v110 = vunpack.c.l.b16 %v65
    %v111 = vunpack.c.l.b16 %v66
    %v112 = vpack.c.b16 %v97, %v96
    %v113 = vpack.c.b16 %v99, %v98
    %v114 = vpack.c.b16 %v101, %v100
    %v115 = vpack.c.b16 %v103, %v102
    %v116 = vpack.c.b16 %v105, %v104
    %v117 = vpack.c.b16 %v107, %v106
    %v118 = vpack.c.b16 %v109, %v108
    %v119 = vpack.c.b16 %v111, %v110
    %128 = vmatprep.subr.bf16.mxu0 0
    %129 = vmatpush1.bf16.msra.mxu0 %v119
    %130 = vmatprep.subr.bf16.mxu0 0
    %131 = vmatpush1.bf16.msra.mxu0 %v118
    %132 = vmatprep.subr.bf16.mxu0 0
    %133 = vmatpush1.bf16.msra.mxu0 %v117
    %134 = vmatprep.subr.bf16.mxu0 0
    %135 = vmatpush1.bf16.msra.mxu0 %v116
    %136 = vmatprep.subr.bf16.mxu0 0
    %137 = vmatpush1.bf16.msra.mxu0 %v115
    %138 = vmatprep.subr.bf16.mxu0 0
    %139 = vmatpush1.bf16.msra.mxu0 %v114
    %140 = vmatprep.subr.bf16.mxu0 0
    %141 = vmatpush1.bf16.msra.mxu0 %v113
    %142 = vmatprep.subr.bf16.mxu0 0
    %143 = vmatpush1.bf16.msra.mxu0 %v112
    %144 = vmatprep.subr.bf16.mxu0 0
    %145 = vmatpush2.bf16.msra.mxu0 0
    %146 = vmatprep.subr.bf16.mxu0 0
    %147 = vmatpush2.bf16.msra.mxu0 0
    %148 = vmatprep.subr.bf16.mxu0 0
    %149 = vmatpush2.bf16.msra.mxu0 0
    %150 = vmatprep.subr.bf16.mxu0 0
    %151 = vmatpush2.bf16.msra.mxu0 0
    %152 = vmatprep.subr.bf16.mxu0 0
    %153 = vmatpush2.bf16.msra.mxu0 0
    %154 = vmatprep.subr.bf16.mxu0 0
    %155 = vmatpush2.bf16.msra.mxu0 0
    %156 = vmatprep.subr.bf16.mxu0 0
    %157 = vmatpush2.bf16.msra.mxu0 0
    %158 = vmatprep.subr.bf16.mxu0 0
    %159 = vmatpush2.bf16.msra.mxu0 0
    %160 = vmatprep.mubr.bf16.mxu0 0
    %161 = vmatmul.mubr.bf16.gmra.mxu0 %v78
    %v162 = vpop.f32.mrf.mxu0
    %v163 = vadd.f32 %v72, %v162
    %v164 = vpop.f32.mrf.mxu0
    %v165 = vpop.f32.mrf.mxu0
    %v166 = vadd.f32 %v72, %v165
    %v167 = vpop.f32.mrf.mxu0
    %168 = vdwg.mxu0
    %v169 = vmax.f32 %v163, 0.0
    %v170 = vmax.f32 %v166, 0.0
    %v171 = vpack.c.bf16 %v170, %v169
    %v172 = vld [vmem:[#allocation4] sm:$0xf]
    %v173 = vld [vmem:[#allocation4 + $0x4] sm:$0xf]
    %v174 = vld [vmem:[#allocation4 + $0x8] sm:$0xf]
    %v175 = vld [vmem:[#allocation4 + $0xc] sm:$0xf]
    %v176 = vld [vmem:[#allocation4 + $0x10] sm:$0xf]
    %v177 = vld [vmem:[#allocation4 + $0x14] sm:$0xf]
    %v178 = vld [vmem:[#allocation4 + $0x18] sm:$0xf]
    %v179 = vld [vmem:[#allocation4 + $0x1c] sm:$0xf]
    %v180 = vld [vmem:[#allocation4 + $0x20] sm:$0xf]
    %v181 = vld [vmem:[#allocation4 + $0x24] sm:$0xf]
    %v182 = vld [vmem:[#allocation4 + $0x28] sm:$0xf]
    %v183 = vld [vmem:[#allocation4 + $0x2c] sm:$0xf]
    %v184 = vld [vmem:[#allocation4 + $0x30] sm:$0xf]
    %v185 = vld [vmem:[#allocation4 + $0x34] sm:$0xf]
    %v186 = vld [vmem:[#allocation4 + $0x38] sm:$0xf]
    %v187 = vld [vmem:[#allocation4 + $0x3c] sm:$0xf]
    %v188 = vld [vmem:[%s4] sm:$0x1]
    %v190 = vlaneseq
    %v191 = vshrl.u32 %v190, 7
    %v192 = vsub.s32 0, %v191
    %v193 = vrot.slane %v188, %v192
    %v211 = vunpack.c.l.b16 %v172
    %v212 = vunpack.c.l.b16 %v173
    %v213 = vunpack.c.l.b16 %v174
    %v214 = vunpack.c.l.b16 %v175
    %v215 = vunpack.c.l.b16 %v176
    %v216 = vunpack.c.l.b16 %v177
    %v217 = vunpack.c.l.b16 %v178
    %v218 = vunpack.c.l.b16 %v179
    %v219 = vunpack.c.l.b16 %v180
    %v220 = vunpack.c.l.b16 %v181
    %v221 = vunpack.c.l.b16 %v182
    %v222 = vunpack.c.l.b16 %v183
    %v223 = vunpack.c.l.b16 %v184
    %v224 = vunpack.c.l.b16 %v185
    %v225 = vunpack.c.l.b16 %v186
    %v226 = vunpack.c.l.b16 %v187
    %v227 = vpack.c.b16 %v212, %v211
    %v228 = vpack.c.b16 %v214, %v213
    %v229 = vpack.c.b16 %v216, %v215
    %v230 = vpack.c.b16 %v218, %v217
    %v231 = vpack.c.b16 %v220, %v219
    %v232 = vpack.c.b16 %v222, %v221
    %v233 = vpack.c.b16 %v224, %v223
    %v234 = vpack.c.b16 %v226, %v225
    %243 = vmatprep.subr.bf16.mxu0 0
    %244 = vmatpush1.bf16.msra.mxu0 %v234
    %245 = vmatprep.subr.bf16.mxu0 0
    %246 = vmatpush1.bf16.msra.mxu0 %v233
    %247 = vmatprep.subr.bf16.mxu0 0
    %248 = vmatpush1.bf16.msra.mxu0 %v232
    %249 = vmatprep.subr.bf16.mxu0 0
    %250 = vmatpush1.bf16.msra.mxu0 %v231
    %251 = vmatprep.subr.bf16.mxu0 0
    %252 = vmatpush1.bf16.msra.mxu0 %v230
    %253 = vmatprep.subr.bf16.mxu0 0
    %254 = vmatpush1.bf16.msra.mxu0 %v229
    %255 = vmatprep.subr.bf16.mxu0 0
    %256 = vmatpush1.bf16.msra.mxu0 %v228
    %257 = vmatprep.subr.bf16.mxu0 0
    %258 = vmatpush1.bf16.msra.mxu0 %v227
    %259 = vmatprep.subr.bf16.mxu0 0
    %260 = vmatpush2.bf16.msra.mxu0 0
    %261 = vmatprep.subr.bf16.mxu0 0
    %262 = vmatpush2.bf16.msra.mxu0 0
    %263 = vmatprep.subr.bf16.mxu0 0
    %264 = vmatpush2.bf16.msra.mxu0 0
    %265 = vmatprep.subr.bf16.mxu0 0
    %266 = vmatpush2.bf16.msra.mxu0 0
    %267 = vmatprep.subr.bf16.mxu0 0
    %268 = vmatpush2.bf16.msra.mxu0 0
    %269 = vmatprep.subr.bf16.mxu0 0
    %270 = vmatpush2.bf16.msra.mxu0 0
    %271 = vmatprep.subr.bf16.mxu0 0
    %272 = vmatpush2.bf16.msra.mxu0 0
    %273 = vmatprep.subr.bf16.mxu0 0
    %274 = vmatpush2.bf16.msra.mxu0 0
    %275 = vmatprep.mubr.bf16.mxu0 0
    %276 = vmatmul.mubr.bf16.gmra.mxu0 %v171
    %v277 = vpop.f32.mrf.mxu0
    %v278 = vadd.f32 %v193, %v277
    %v279 = vpop.f32.mrf.mxu0
    %v280 = vpop.f32.mrf.mxu0
    %v281 = vadd.f32 %v193, %v280
    %v282 = vpop.f32.mrf.mxu0
    %283 = vdwg.mxu0
    %284 = vst [vmem:[%s5] sm:$0xff] %v278
    %285 = vst [vmem:[%s5 + $0x8] sm:$0xff] %v281
    // Predicated region
    $region30: #{_forward_padded.1} parent=1 // pred_check
      _
    $region31: #{_forward_padded.1} parent=1 // pred_check_branch
      %287 = sbr.rel (0) target = $region33
    $region32: #{_forward_padded.1} parent=1 // pred_region
      _
    $region33: #{_forward_padded.1} parent=1 // pred_fallthru
      _
    // Predicated region
    $region34: #{_forward_padded.1} parent=1 // pred_check
      _
    $region35: #{_forward_padded.1} parent=1 // pred_check_branch
      %289 = sbr.rel (0) target = $region37
    $region36: #{_forward_padded.1} parent=1 // pred_region
      _
    $region37: #{_forward_padded.1} parent=1 // pred_fallthru
      _
    %290 = vsyncpa [#allocation3], 1
    %291 = vsyncpa [#allocation5], 1

</llo_original>
